<compile_context>
chip_gen: v7x
topology: tpu7x:2x2x1
jax: 0.10.0
libtpu: 0.0.40
codegen_flags: <defaults>
</compile_context>

<pallas_src>
import functools

import jax
import jax.numpy as jnp
from jax.experimental import pallas as pl
from jax.experimental.pallas import tpu as pltpu


def _la_op_kernel(x_ref, w_ref, b_ref, o_ref, *, num_layers, hp, fused):
    # x_ref: (L, t, HP)      lane-packed node-state tile, one slab per layer
    # w_ref: (L*HP, HP)      flattened block-diagonal weight (resident)
    # b_ref: (1, HP)         bias, tiled over the P packed nodes (resident)
    # o_ref: (t, HP)         lane-packed output tile
    if fused:
        # relu(cat(x)) == cat(relu(x)); pieces are 128-lane aligned so this concat
        # is just vreg placement, and the single dot keeps K-accumulation in the MXU.
        hcat = jnp.concatenate(
            [jnp.maximum(x_ref[l], 0.0) for l in range(num_layers)], axis=-1)
        acc = jnp.dot(hcat, w_ref[...], preferred_element_type=jnp.float32)
    else:
        # Fallback for lane widths that are not a multiple of 128 (rare shapes).
        acc = jnp.dot(jnp.maximum(x_ref[0], 0.0), w_ref[0:hp, :],
                      preferred_element_type=jnp.float32)
        for l in range(1, num_layers):
            acc = acc + jnp.dot(jnp.maximum(x_ref[l], 0.0),
                                w_ref[l * hp:(l + 1) * hp, :],
                                preferred_element_type=jnp.float32)
    # Bias + tanh fused into the epilogue (single write of the output tile).
    o_ref[...] = jnp.tanh(acc + b_ref[...]).astype(o_ref.dtype)


def _round_up(a, m):
    return ((a + m - 1) // m) * m


def _tensorcores_per_device():
    # Only multi-TensorCore parts benefit from forcing several grid steps.
    try:
        kind = (jax.devices()[0].device_kind or "").lower()
    except Exception:
        return 1
    return 2 if any(tag in kind for tag in ("v4", "v5p", "v7")) else 1


def _packing(hidden, n_nodes):
    """Pick (h_pad, P) so the packed lane width P*h_pad is 128-dense whenever
    possible, and P divides n_nodes (no HBM rematerialization of x)."""
    H = hidden
    if H <= 128 and 128 % H == 0:
        h_pad = H
    elif H % 128 == 0:
        h_pad = H
    elif H < 128:
        h_pad = 1 << (H - 1).bit_length()          # next pow2 -> divides 128
    else:
        h_pad = _round_up(H, 128)
    p = max(1, 128 // h_pad)
    while p > 1 and n_nodes % p:
        p //= 2
    return h_pad, p


def la_op_pack_weights(w, b, num_layers, hidden, h_pad, pack):
    """Build the lane-packed block-diagonal weight/bias (hoistable per parameter set)."""
    L, H, P = num_layers, hidden, pack
    hp = P * h_pad
    w_l = w.reshape(L, H, H)
    b_l = b
    if h_pad != H:
        w_l = jnp.pad(w_l, ((0, 0), (0, h_pad - H), (0, h_pad - H)))
        b_l = jnp.pad(b, (0, h_pad - H))
    # w_big[(l, p, h), (q, j)] = w[l, h, j] * (p == q): block-diagonal over the P
    # nodes folded into the lane axis, flattened to one (L*hp, hp) matrix so the
    # kernel runs a single (t, L*hp) @ (L*hp, hp) contraction.
    eye_p = jnp.eye(P, dtype=w.dtype)
    w_big = jnp.einsum('pq,lhj->lphqj', eye_p, w_l).reshape(L * hp, hp)
    b_big = jnp.tile(b_l, P).reshape(1, hp)
    return w_big, b_big


def la_op(x_layers, w, b, *, tile_rows=1024):
    """LaOp('l_concat', hidden, 'tanh', num_layers) forward.

    x_layers: [L, N, H]  per-layer node states (JumpingKnowledge inputs, stacked).
    w:        [L*H, H]   weight of Linear(hidden*num_layers, hidden).
    b:        [H]        bias.
    returns   [N, H]     tanh(relu(cat(x_layers, -1)) @ w + b)
    """
    L, N, H = x_layers.shape
    assert w.shape == (L * H, H) and b.shape == (H,)
    dtype = x_layers.dtype

    h_pad, P = _packing(H, N)
    HP = P * h_pad
    if h_pad != H:
        # Rare path (awkward H): pad hidden so stores stay lane-dense (copies x once).
        x_layers = jnp.pad(x_layers, ((0, 0), (0, 0), (0, h_pad - H)))

    rows = N // P                                   # packed rows, P nodes each
    x_packed = x_layers.reshape(L, rows, HP)        # contiguous -> free reshape

    rows_arr = rows
    if rows < 8:                                    # tiny graphs: pad to one (8,*) block
        x_packed = jnp.pad(x_packed, ((0, 0), (0, 8 - rows), (0, 0)))
        rows_arr = 8

    w_big, b_big = la_op_pack_weights(w, b, L, H, h_pad, P)

    # --- tile / grid selection ------------------------------------------------
    t_cap = max((rows_arr // 8) * 8, 8)             # block dim never exceeds array dim
    t = min(_round_up(tile_rows, 8), t_cap)
    ncores = _tensorcores_per_device()
    if ncores > 1 and t > 256:
        # >=2 pipelined steps per TensorCore on multi-TC parts, but keep tiles
        # >= ~256 packed rows so each step stays near the HBM roofline.
        per_step = _round_up(pl.cdiv(rows_arr, 2 * ncores), 8)
        t = min(t, max(per_step, 256))
    grid = (pl.cdiv(rows_arr, t),)

    fused = (HP % 128 == 0)                         # lane-aligned concat + single dot

    vmem_need = 4 * (2 * L * t * HP + 2 * t * HP + 2 * L * HP * HP + 2 * HP)
    vmem_limit = int(min(max(vmem_need + (8 << 20), 16 << 20), 40 << 20))

    kernel = functools.partial(_la_op_kernel, num_layers=L, hp=HP, fused=fused)

    # (w/b use constant index maps; Pallas fetches them once.  Single-buffering via
    #  pipeline_mode=pl.Buffered(1) would only save ~2*L*HP*HP*4 bytes of VMEM and is
    #  skipped for portability.)
    out = pl.pallas_call(
        kernel,
        out_shape=jax.ShapeDtypeStruct((rows_arr, HP), dtype),
        grid_spec=pltpu.PrefetchScalarGridSpec(
            num_scalar_prefetch=0,
            grid=grid,
            in_specs=[
                pl.BlockSpec((L, t, HP), lambda i: (0, i, 0)),   # packed node tile
                pl.BlockSpec((L * HP, HP), lambda i: (0, 0)),    # weights, resident
                pl.BlockSpec((1, HP), lambda i: (0, 0)),         # bias, resident
            ],
            out_specs=pl.BlockSpec((t, HP), lambda i: (i, 0)),
        ),
        compiler_params=pltpu.CompilerParams(
            dimension_semantics=("parallel",),
            vmem_limit_bytes=vmem_limit,
        ),
    )(x_packed, w_big, b_big)

    # Contiguous (free) unpack: (rows, P*h_pad) -> (N, h_pad), then crop padded cols.
    out = out[:rows].reshape(N, h_pad)
    if h_pad != H:
        out = out[:, :H]
    return out


def la_op_reference(x_layers, w, b):
    L, N, H = x_layers.shape
    x_cat = jnp.transpose(x_layers, (1, 0, 2)).reshape(N, L * H)
    return jnp.tanh(jnp.maximum(x_cat, 0.0) @ w + b)


if __name__ == "__main__":
    num_layers = 3
    hidden = 32
    N = 128  # number of graph nodes

    key = jax.random.PRNGKey(0)
    kx, kw, kb = jax.random.split(key, 3)

    # layer states: [num_layers, N, hidden]
    x = jax.random.normal(kx, (num_layers, N, hidden), dtype=jnp.float32)

    # Linear(hidden*num_layers -> hidden), PyTorch-style uniform init, deterministic.
    fan_in = num_layers * hidden
    bound = 1.0 / (fan_in ** 0.5)
    w = jax.random.uniform(kw, (fan_in, hidden), minval=-bound, maxval=bound,
                           dtype=jnp.float32)
    b = jax.random.uniform(kb, (hidden,), minval=-bound, maxval=bound,
                           dtype=jnp.float32)

    la_op_jit = jax.jit(la_op)          # hoists/fuses the weight packing with the call
    out = jax.block_until_ready(la_op_jit(x, w, b))

    ref = la_op_reference(x, w, b)
    assert out.shape == (N, hidden)
    assert jnp.allclose(out, ref, atol=1e-5, rtol=1e-5), "mismatch vs reference"

    print("KERNEL_OK")
</pallas_src>

<mosaic_0001>
module attributes {stable_mosaic.version = 11 : i64} {
  func.func @_la_op_kernel(%arg0: i32, %arg1: memref<3x32x128xf32, #tpu.memory_space<vmem>>, %arg2: memref<384x128xf32, #tpu.memory_space<vmem>>, %arg3: memref<1x128xf32, #tpu.memory_space<vmem>>, %arg4: memref<32x128xf32, #tpu.memory_space<vmem>>) attributes {dimension_semantics = [#tpu.dimension_semantics<parallel>], iteration_bounds = array<i64: 1>, scalar_prefetch = 0 : i64, scratch_operands = 0 : i64, tpu.core_type = #tpu.core_type<tc>, window_params = [{transform_indices = @transform_0, window_bounds = array<i64: 3, 32, 128>}, {pipeline_mode = #tpu.pipeline_mode<synchronous>, transform_indices = @transform_1, window_bounds = array<i64: 384, 128>}, {pipeline_mode = #tpu.pipeline_mode<synchronous>, transform_indices = @transform_2, window_bounds = array<i64: 1, 128>}, {transform_indices = @transform_3, window_bounds = array<i64: 32, 128>}]} {
    %c0 = arith.constant 0 : index
    %c0_0 = arith.constant 0 : index
    %c0_1 = arith.constant 0 : index
    %0 = vector.load %arg1[%c0, %c0_0, %c0_1] : memref<3x32x128xf32, #tpu.memory_space<vmem>>, vector<1x32x128xf32>
    %1 = vector.shape_cast %0 : vector<1x32x128xf32> to vector<32x128xf32>
    %cst = arith.constant 0.000000e+00 : f32
    %2 = vector.broadcast %cst : f32 to vector<32x128xf32>
    %3 = arith.maximumf %1, %2 : vector<32x128xf32>
    %c1 = arith.constant 1 : index
    %c0_2 = arith.constant 0 : index
    %c0_3 = arith.constant 0 : index
    %4 = vector.load %arg1[%c1, %c0_2, %c0_3] : memref<3x32x128xf32, #tpu.memory_space<vmem>>, vector<1x32x128xf32>
    %5 = vector.shape_cast %4 : vector<1x32x128xf32> to vector<32x128xf32>
    %cst_4 = arith.constant 0.000000e+00 : f32
    %6 = vector.broadcast %cst_4 : f32 to vector<32x128xf32>
    %7 = arith.maximumf %5, %6 : vector<32x128xf32>
    %c2 = arith.constant 2 : index
    %c0_5 = arith.constant 0 : index
    %c0_6 = arith.constant 0 : index
    %8 = vector.load %arg1[%c2, %c0_5, %c0_6] : memref<3x32x128xf32, #tpu.memory_space<vmem>>, vector<1x32x128xf32>
    %9 = vector.shape_cast %8 : vector<1x32x128xf32> to vector<32x128xf32>
    %cst_7 = arith.constant 0.000000e+00 : f32
    %10 = vector.broadcast %cst_7 : f32 to vector<32x128xf32>
    %11 = arith.maximumf %9, %10 : vector<32x128xf32>
    %12 = tpu.concatenate %3, %7, %11 in 1 : vector<32x128xf32>, vector<32x128xf32>, vector<32x128xf32> -> vector<32x384xf32>
    %c0_8 = arith.constant 0 : index
    %c0_9 = arith.constant 0 : index
    %13 = vector.load %arg2[%c0_8, %c0_9] : memref<384x128xf32, #tpu.memory_space<vmem>>, vector<384x128xf32>
    %cst_10 = arith.constant dense<0.000000e+00> : vector<32x128xf32>
    %14 = tpu.matmul %12, %13, %cst_10 {dimension_numbers = #tpu.dot_dimension_numbers<[1], [0], [0], [1], [0, 0, 1, 1], [], []>} : vector<32x384xf32>, vector<384x128xf32>, vector<32x128xf32> -> vector<32x128xf32>
    %c0_11 = arith.constant 0 : index
    %c0_12 = arith.constant 0 : index
    %15 = vector.load %arg3[%c0_11, %c0_12] : memref<1x128xf32, #tpu.memory_space<vmem>>, vector<1x128xf32>
    %16 = vector.broadcast %15 : vector<1x128xf32> to vector<32x128xf32>
    %17 = arith.addf %14, %16 : vector<32x128xf32>
    %18 = math.tanh %17 : vector<32x128xf32>
    %c0_13 = arith.constant 0 : index
    %c0_14 = arith.constant 0 : index
    %19 = vector.load %arg4[%c0_13, %c0_14] : memref<32x128xf32, #tpu.memory_space<vmem>>, vector<32x128xf32>
    tpu.vector_store %arg4[%c0_13, %c0_14], %18 {strides = array<i32>} : memref<32x128xf32, #tpu.memory_space<vmem>>, vector<32x128xf32>,
    return
  }
  func.func @transform_0(%arg0: i32) -> (i32, i32, i32) {
    %c0_i32 = arith.constant 0 : i32
    %c0_i32_0 = arith.constant 0 : i32
    %c0_i32_1 = arith.constant 0 : i32
    return %c0_i32, %arg0, %c0_i32_0 : i32, i32, i32
  }
  func.func @transform_1(%arg0: i32) -> (i32, i32) {
    %c0_i32 = arith.constant 0 : i32
    %c0_i32_0 = arith.constant 0 : i32
    %c0_i32_1 = arith.constant 0 : i32
    return %c0_i32, %c0_i32_0 : i32, i32
  }
  func.func @transform_2(%arg0: i32) -> (i32, i32) {
    %c0_i32 = arith.constant 0 : i32
    %c0_i32_0 = arith.constant 0 : i32
    %c0_i32_1 = arith.constant 0 : i32
    return %c0_i32, %c0_i32_0 : i32, i32
  }
  func.func @transform_3(%arg0: i32) -> (i32, i32) {
    %c0_i32 = arith.constant 0 : i32
    %c0_i32_0 = arith.constant 0 : i32
    return %arg0, %c0_i32 : i32, i32
  }
}

</mosaic_0001>

<llo_original>
// kernel: tile.8
$region0: #{tile.8}
  #allocation0 [shape = 's32[1]{0}', space=sflag, size = 0x4, scoped, tag = 'scoped memory for tile.8']
  %s0 = inlined_call_operand.vmem [shape: f32[32], index: 0, kind: input, shape index: {}]
  %s1 = inlined_call_operand.vmem [shape: f32[4,32], index: 1, kind: output, shape index: {}]
  // Predicated region
  $region2: #{tile.8} parent=0 // pred_check
    _
  $region3: #{tile.8} parent=0 // pred_check_branch
    %3 = sbr.rel (0) target = $region5
  $region4: #{tile.8} parent=0 // pred_region
    _
  $region5: #{tile.8} parent=0 // pred_fallthru
    _
  %v4 = vld [vmem:[%s0] ss:$0 sm:$0xff]
  %5 = vst [vmem:[%s1] sm:$0xf] %v4

// kernel: tile.9
$region0: #{tile.9}
  %s0 = inlined_call_operand.vmem [shape: f32[4,32], index: 0, kind: input, shape index: {}]
  %s1 = inlined_call_operand.vmem [shape: f32[1,128], index: 1, kind: output, shape index: {}]
  $region1: #{tile.9} parent=0
    #allocation0 [shape = 'u8[4096]{0}', space=vmem, size = 0x1000, scoped, tag = 'scoped mem for output reshape']
    #allocation1 [shape = 'u8[4096]{0}', space=vmem, size = 0x1000, scoped, tag = 'scoped mem for input reshape']
    %s3 = sshllo.u32 0, 4
    %v4 = vld [vmem:[%s0] sm:%s3]
    %5 = vst [vmem:[#allocation1] sm:%s3] %v4
    %v6 = vld [vmem:[#allocation1] sm:$0x1]
    %vm7 = vcmask 261120
    %8 = vst.msk [vmem:[#allocation0] sm:$0x1] %vm7, %v6
    %s9 = scalar_lea.vmem [#allocation1], 3
    %v10 = vld [vmem:[%s9] sm:$0x1]
    %11 = vrot.lane.b32.xlu0 %v10, 96
    %v12 = vpop.permute.xlu0 %11
    %vm13 = vcmask 1048320
    %14 = vst.msk [vmem:[#allocation0] sm:$0x1] %vm13, %v12
    %s15 = scalar_lea.vmem [#allocation1], 2
    %v16 = vld [vmem:[%s15] sm:$0x1]
    %17 = vrot.lane.b32.xlu0 %v16, 64
    %v18 = vpop.permute.xlu0 %17
    %vm19 = vcmask 785920
    %20 = vst.msk [vmem:[#allocation0] sm:$0x1] %vm19, %v18
    %s21 = scalar_lea.vmem [#allocation1], 1
    %v22 = vld [vmem:[%s21] sm:$0x1]
    %23 = vrot.lane.b32.xlu0 %v22, 32
    %v24 = vpop.permute.xlu0 %23
    %vm25 = vcmask 523520
    %26 = vst.msk [vmem:[#allocation0] sm:$0x1] %vm25, %v24
    %s28 = sshllo.u32 0, 1
    %v30 = vld [vmem:[#allocation0] sm:%s28]
    %s31 = sshllo.u32 0, 1
    %32 = vst [vmem:[%s1] sm:%s31] %v30

// kernel: la_op.1
$region0: #{la_op.1}
  #allocation0 [shape = 'u32[]', space=smem, size = 0x4, offset = 0x4, fixed_abs, tag = 'smem constant byte address 0x4 - core index']
  #allocation1 [shape = 'u32[144,128]{1,0:T(1,128)}', space=vmem, size = 0x12000, scoped, tag = 'internal scratch']
  %s0 = inlined_call_operand.vmem [shape: f32[3,32,128], index: 0, kind: input, shape index: {}]
  %s1 = inlined_call_operand.vmem [shape: f32[384,128], index: 1, kind: input, shape index: {}]
  %s2 = inlined_call_operand.vmem [shape: f32[1,128], index: 2, kind: input, shape index: {}]
  %s3 = inlined_call_operand.vmem [shape: f32[32,128], index: 3, kind: output, shape index: {}]
  %s4 = sld [smem:[#allocation0]]
  $region22: #{la_op.1} parent=0
    _
  %s6 = ssub.s32 1, %s4
  %s7 = scalar_select 0, %s6, %s4
  // Predicated region
  $region2: #{la_op.1} parent=0 // pred_check
    _
  $region3: #{la_op.1} parent=0 // pred_check_branch
    %9 = sbr.rel (0) target = $region5
  $region4: #{la_op.1} parent=0 // pred_region
    _
  $region5: #{la_op.1} parent=0 // pred_fallthru
    _
  // Predicated region
  $region6: #{la_op.1} parent=0 // pred_check
    _
  $region7: #{la_op.1} parent=0 // pred_check_branch
    %11 = sbr.rel (0) target = $region9
  $region8: #{la_op.1} parent=0 // pred_region
    _
  $region9: #{la_op.1} parent=0 // pred_fallthru
    _
  // Predicated region
  $region10: #{la_op.1} parent=0 // pred_check
    _
  $region11: #{la_op.1} parent=0 // pred_check_branch
    %13 = sbr.rel (0) target = $region13
  $region12: #{la_op.1} parent=0 // pred_region
    _
  $region13: #{la_op.1} parent=0 // pred_fallthru
    _
  %v14 = vld [vmem:[%s0] sm:$0xff]
  %v15 = vld [vmem:[%s0 + $0x8] sm:$0xff]
  %v16 = vld [vmem:[%s0 + $0x10] sm:$0xff]
  %v17 = vld [vmem:[%s0 + $0x18] sm:$0xff]
  %v18 = vmax.f32 %v14, 0.0
  %v19 = vmax.f32 %v15, 0.0
  %v20 = vmax.f32 %v16, 0.0
  %v21 = vmax.f32 %v17, 0.0
  %s22 = scalar_lea.vmem %s0, 32
  %v23 = vld [vmem:[%s22] sm:$0xff]
  %v24 = vld [vmem:[%s22 + $0x8] sm:$0xff]
  %v25 = vld [vmem:[%s22 + $0x10] sm:$0xff]
  %v26 = vld [vmem:[%s22 + $0x18] sm:$0xff]
  %v27 = vmax.f32 %v23, 0.0
  %v28 = vmax.f32 %v24, 0.0
  %v29 = vmax.f32 %v25, 0.0
  %v30 = vmax.f32 %v26, 0.0
  %s31 = scalar_lea.vmem %s0, 64
  %v32 = vld [vmem:[%s31] sm:$0xff]
  %v33 = vld [vmem:[%s31 + $0x8] sm:$0xff]
  %v34 = vld [vmem:[%s31 + $0x10] sm:$0xff]
  %v35 = vld [vmem:[%s31 + $0x18] sm:$0xff]
  %v36 = vmax.f32 %v32, 0.0
  %v37 = vmax.f32 %v33, 0.0
  %v38 = vmax.f32 %v34, 0.0
  %v39 = vmax.f32 %v35, 0.0
  %v40 = vld [vmem:[%s1] sm:$0xff]
  %v41 = vld [vmem:[%s1 + $0x8] sm:$0xff]
  %v42 = vld [vmem:[%s1 + $0x10] sm:$0xff]
  %v43 = vld [vmem:[%s1 + $0x18] sm:$0xff]
  %v44 = vld [vmem:[%s1 + $0x20] sm:$0xff]
  %v45 = vld [vmem:[%s1 + $0x28] sm:$0xff]
  %v46 = vld [vmem:[%s1 + $0x30] sm:$0xff]
  %v47 = vld [vmem:[%s1 + $0x38] sm:$0xff]
  %v48 = vld [vmem:[%s1 + $0x40] sm:$0xff]
  %v49 = vld [vmem:[%s1 + $0x48] sm:$0xff]
  %v50 = vld [vmem:[%s1 + $0x50] sm:$0xff]
  %v51 = vld [vmem:[%s1 + $0x58] sm:$0xff]
  %v52 = vld [vmem:[%s1 + $0x60] sm:$0xff]
  %v53 = vld [vmem:[%s1 + $0x68] sm:$0xff]
  %v54 = vld [vmem:[%s1 + $0x70] sm:$0xff]
  %v55 = vld [vmem:[%s1 + $0x78] sm:$0xff]
  %v56 = vld [vmem:[%s1 + $0x80] sm:$0xff]
  %v57 = vld [vmem:[%s1 + $0x88] sm:$0xff]
  %v58 = vld [vmem:[%s1 + $0x90] sm:$0xff]
  %v59 = vld [vmem:[%s1 + $0x98] sm:$0xff]
  %v60 = vld [vmem:[%s1 + $0xa0] sm:$0xff]
  %v61 = vld [vmem:[%s1 + $0xa8] sm:$0xff]
  %v62 = vld [vmem:[%s1 + $0xb0] sm:$0xff]
  %v63 = vld [vmem:[%s1 + $0xb8] sm:$0xff]
  %v64 = vld [vmem:[%s1 + $0xc0] sm:$0xff]
  %v65 = vld [vmem:[%s1 + $0xc8] sm:$0xff]
  %v66 = vld [vmem:[%s1 + $0xd0] sm:$0xff]
  %v67 = vld [vmem:[%s1 + $0xd8] sm:$0xff]
  %v68 = vld [vmem:[%s1 + $0xe0] sm:$0xff]
  %v69 = vld [vmem:[%s1 + $0xe8] sm:$0xff]
  %v70 = vld [vmem:[%s1 + $0xf0] sm:$0xff]
  %v71 = vld [vmem:[%s1 + $0xf8] sm:$0xff]
  %v72 = vld [vmem:[%s1 + $0x100] sm:$0xff]
  %v73 = vld [vmem:[%s1 + $0x108] sm:$0xff]
  %v74 = vld [vmem:[%s1 + $0x110] sm:$0xff]
  %v75 = vld [vmem:[%s1 + $0x118] sm:$0xff]
  %v76 = vld [vmem:[%s1 + $0x120] sm:$0xff]
  %v77 = vld [vmem:[%s1 + $0x128] sm:$0xff]
  %v78 = vld [vmem:[%s1 + $0x130] sm:$0xff]
  %v79 = vld [vmem:[%s1 + $0x138] sm:$0xff]
  %v80 = vld [vmem:[%s1 + $0x140] sm:$0xff]
  %v81 = vld [vmem:[%s1 + $0x148] sm:$0xff]
  %v82 = vld [vmem:[%s1 + $0x150] sm:$0xff]
  %v83 = vld [vmem:[%s1 + $0x158] sm:$0xff]
  %v84 = vld [vmem:[%s1 + $0x160] sm:$0xff]
  %v85 = vld [vmem:[%s1 + $0x168] sm:$0xff]
  %v86 = vld [vmem:[%s1 + $0x170] sm:$0xff]
  %v87 = vld [vmem:[%s1 + $0x178] sm:$0xff]
  %v88 = vld [vmem:[%s2] sm:$0x1]
  %v90 = vlaneseq
  %v91 = vshrl.u32 %v90, 7
  %v92 = vsub.s32 0, %v91
  %v93 = vrot.slane %v88, %v92
  %95 = vmatprep.subr.mxu0 0.0
  %96 = vmatpush1.msra.mxu0 %v40
  %97 = vmatprep.subr.mxu0 0.0
  %98 = vmatpush1.msra.mxu0 %v41
  %99 = vmatprep.subr.mxu0 0.0
  %100 = vmatpush1.msra.mxu0 %v42
  %101 = vmatprep.subr.mxu0 0.0
  %102 = vmatpush1.msra.mxu0 %v43
  %103 = vmatprep.subr.mxu0 0.0
  %104 = vmatpush1.msra.mxu0 %v44
  %105 = vmatprep.subr.mxu0 0.0
  %106 = vmatpush1.msra.mxu0 %v45
  %107 = vmatprep.subr.mxu0 0.0
  %108 = vmatpush1.msra.mxu0 %v46
  %109 = vmatprep.subr.mxu0 0.0
  %110 = vmatpush1.msra.mxu0 %v47
  %111 = vmatprep.subr.mxu0 0.0
  %112 = vmatpush1.msra.mxu0 %v48
  %113 = vmatprep.subr.mxu0 0.0
  %114 = vmatpush1.msra.mxu0 %v49
  %115 = vmatprep.subr.mxu0 0.0
  %116 = vmatpush1.msra.mxu0 %v50
  %117 = vmatprep.subr.mxu0 0.0
  %118 = vmatpush1.msra.mxu0 %v51
  %119 = vmatprep.subr.mxu0 0.0
  %120 = vmatpush1.msra.mxu0 %v52
  %121 = vmatprep.subr.mxu0 0.0
  %122 = vmatpush1.msra.mxu0 %v53
  %123 = vmatprep.subr.mxu0 0.0
  %124 = vmatpush1.msra.mxu0 %v54
  %125 = vmatprep.subr.mxu0 0.0
  %126 = vmatpush1.msra.mxu0 %v55
  %127 = vmatprep.subr.mxu0 0.0
  %128 = vmatpush1.msra.mxu0 %v56
  %129 = vmatprep.subr.mxu0 0.0
  %130 = vmatpush1.msra.mxu0 %v57
  %131 = vmatprep.subr.mxu0 0.0
  %132 = vmatpush1.msra.mxu0 %v58
  %133 = vmatprep.subr.mxu0 0.0
  %134 = vmatpush1.msra.mxu0 %v59
  %135 = vmatprep.subr.mxu0 0.0
  %136 = vmatpush1.msra.mxu0 %v60
  %137 = vmatprep.subr.mxu0 0.0
  %138 = vmatpush1.msra.mxu0 %v61
  %139 = vmatprep.subr.mxu0 0.0
  %140 = vmatpush1.msra.mxu0 %v62
  %141 = vmatprep.subr.mxu0 0.0
  %142 = vmatpush1.msra.mxu0 %v63
  %143 = vmatprep.subr.mxu0 0.0
  %144 = vmatpush1.msra.mxu0 %v64
  %145 = vmatprep.subr.mxu0 0.0
  %146 = vmatpush1.msra.mxu0 %v65
  %147 = vmatprep.subr.mxu0 0.0
  %148 = vmatpush1.msra.mxu0 %v66
  %149 = vmatprep.subr.mxu0 0.0
  %150 = vmatpush1.msra.mxu0 %v67
  %151 = vmatprep.subr.mxu0 0.0
  %152 = vmatpush1.msra.mxu0 %v68
  %153 = vmatprep.subr.mxu0 0.0
  %154 = vmatpush1.msra.mxu0 %v69
  %155 = vmatprep.subr.mxu0 0.0
  %156 = vmatpush1.msra.mxu0 %v70
  %157 = vmatprep.subr.mxu0 0.0
  %158 = vmatpush1.msra.mxu0 %v71
  %159 = vmatprep.mubr.f32.mxu0 %v27
  %160 = vmatmul.mubr.f32.gmra.mrb[0].mxu0 %v18
  %v161 = vpop.f32.mrb[0].mxu0
  %v162 = vadd.f32 %v93, %v161
  %v163 = vpop.f32.mrb[0].mxu0
  %164 = vmatprep.mubr.f32.mxu0 %v28
  %165 = vmatmul.mubr.f32.gmra.mrb[0].mxu0 %v19
  %v166 = vpop.f32.mrb[0].mxu0
  %v167 = vadd.f32 %v93, %v166
  %v168 = vpop.f32.mrb[0].mxu0
  %169 = vmatprep.mubr.f32.mxu0 %v29
  %170 = vmatmul.mubr.f32.gmra.mrb[0].mxu0 %v20
  %v171 = vpop.f32.mrb[0].mxu0
  %v172 = vadd.f32 %v93, %v171
  %v173 = vpop.f32.mrb[0].mxu0
  %174 = vmatprep.mubr.f32.mxu0 %v30
  %175 = vmatmul.mubr.f32.gmra.mrb[0].mxu0 %v21
  %v176 = vpop.f32.mrb[0].mxu0
  %v177 = vadd.f32 %v93, %v176
  %v178 = vpop.f32.mrb[0].mxu0
  %179 = vdwg.mxu0
  %180 = vmatprep.subr.mxu0 0.0
  %181 = vmatpush1.msra.mxu0 %v72
  %182 = vmatprep.subr.mxu0 0.0
  %183 = vmatpush1.msra.mxu0 %v73
  %184 = vmatprep.subr.mxu0 0.0
  %185 = vmatpush1.msra.mxu0 %v74
  %186 = vmatprep.subr.mxu0 0.0
  %187 = vmatpush1.msra.mxu0 %v75
  %188 = vmatprep.subr.mxu0 0.0
  %189 = vmatpush1.msra.mxu0 %v76
  %190 = vmatprep.subr.mxu0 0.0
  %191 = vmatpush1.msra.mxu0 %v77
  %192 = vmatprep.subr.mxu0 0.0
  %193 = vmatpush1.msra.mxu0 %v78
  %194 = vmatprep.subr.mxu0 0.0
  %195 = vmatpush1.msra.mxu0 %v79
  %196 = vmatprep.subr.mxu0 0.0
  %197 = vmatpush1.msra.mxu0 %v80
  %198 = vmatprep.subr.mxu0 0.0
  %199 = vmatpush1.msra.mxu0 %v81
  %200 = vmatprep.subr.mxu0 0.0
  %201 = vmatpush1.msra.mxu0 %v82
  %202 = vmatprep.subr.mxu0 0.0
  %203 = vmatpush1.msra.mxu0 %v83
  %204 = vmatprep.subr.mxu0 0.0
  %205 = vmatpush1.msra.mxu0 %v84
  %206 = vmatprep.subr.mxu0 0.0
  %207 = vmatpush1.msra.mxu0 %v85
  %208 = vmatprep.subr.mxu0 0.0
  %209 = vmatpush1.msra.mxu0 %v86
  %210 = vmatprep.subr.mxu0 0.0
  %211 = vmatpush1.msra.mxu0 %v87
  %212 = vmatprep.subr.mxu0 0.0
  %213 = vmatpush1.msra.mxu0 0.0
  %214 = vmatprep.subr.mxu0 0.0
  %215 = vmatpush1.msra.mxu0 0.0
  %216 = vmatprep.subr.mxu0 0.0
  %217 = vmatpush1.msra.mxu0 0.0
  %218 = vmatprep.subr.mxu0 0.0
  %219 = vmatpush1.msra.mxu0 0.0
  %220 = vmatprep.subr.mxu0 0.0
  %221 = vmatpush1.msra.mxu0 0.0
  %222 = vmatprep.subr.mxu0 0.0
  %223 = vmatpush1.msra.mxu0 0.0
  %224 = vmatprep.subr.mxu0 0.0
  %225 = vmatpush1.msra.mxu0 0.0
  %226 = vmatprep.subr.mxu0 0.0
  %227 = vmatpush1.msra.mxu0 0.0
  %228 = vmatprep.subr.mxu0 0.0
  %229 = vmatpush1.msra.mxu0 0.0
  %230 = vmatprep.subr.mxu0 0.0
  %231 = vmatpush1.msra.mxu0 0.0
  %232 = vmatprep.subr.mxu0 0.0
  %233 = vmatpush1.msra.mxu0 0.0
  %234 = vmatprep.subr.mxu0 0.0
  %235 = vmatpush1.msra.mxu0 0.0
  %236 = vmatprep.subr.mxu0 0.0
  %237 = vmatpush1.msra.mxu0 0.0
  %238 = vmatprep.subr.mxu0 0.0
  %239 = vmatpush1.msra.mxu0 0.0
  %240 = vmatprep.subr.mxu0 0.0
  %241 = vmatpush1.msra.mxu0 0.0
  %242 = vmatprep.subr.mxu0 0.0
  %243 = vmatpush1.msra.mxu0 0.0
  %244 = vmatprep.mubr.f32.mxu0 0.0
  %245 = vmatmul.mubr.f32.gmra.mrb[0].mxu0 %v36
  %v246 = vpop.f32.mrb[0].mxu0
  %v247 = vadd.f32 %v162, %v246
  %v248 = vpop.f32.mrb[0].mxu0
  %249 = vmatprep.mubr.f32.mxu0 0.0
  %250 = vmatmul.mubr.f32.gmra.mrb[0].mxu0 %v37
  %v251 = vpop.f32.mrb[0].mxu0
  %v252 = vadd.f32 %v167, %v251
  %v253 = vpop.f32.mrb[0].mxu0
  %254 = vmatprep.mubr.f32.mxu0 0.0
  %255 = vmatmul.mubr.f32.gmra.mrb[0].mxu0 %v38
  %v256 = vpop.f32.mrb[0].mxu0
  %v257 = vadd.f32 %v172, %v256
  %v258 = vpop.f32.mrb[0].mxu0
  %259 = vmatprep.mubr.f32.mxu0 0.0
  %260 = vmatmul.mubr.f32.gmra.mrb[0].mxu0 %v39
  %v261 = vpop.f32.mrb[0].mxu0
  %v262 = vadd.f32 %v177, %v261
  %v263 = vpop.f32.mrb[0].mxu0
  %264 = vdwg.mxu0
  %v265 = vtanh.pop %v247
  %v266 = vtanh.pop %v252
  %v267 = vtanh.pop %v257
  %v268 = vtanh.pop %v262
  %269 = vst [vmem:[%s3] sm:$0xff] %v265
  %270 = vst [vmem:[%s3 + $0x8] sm:$0xff] %v266
  %271 = vst [vmem:[%s3 + $0x10] sm:$0xff] %v267
  %272 = vst [vmem:[%s3 + $0x18] sm:$0xff] %v268
  // Predicated region
  $region14: #{la_op.1} parent=0 // pred_check
    _
  $region15: #{la_op.1} parent=0 // pred_check_branch
    %274 = sbr.rel (0) target = $region17
  $region16: #{la_op.1} parent=0 // pred_region
    _
  $region17: #{la_op.1} parent=0 // pred_fallthru
    _
  // Predicated region
  $region18: #{la_op.1} parent=0 // pred_check
    _
  $region19: #{la_op.1} parent=0 // pred_check_branch
    %276 = sbr.rel (0) target = $region21
  $region20: #{la_op.1} parent=0 // pred_region
    _
  $region21: #{la_op.1} parent=0 // pred_fallthru
    _

</llo_original>
